<compile_context>
chip_gen: v5e
topology: v5e:2x2
jax: 0.10.0
libtpu: 0.0.40
codegen_flags: <defaults>
</compile_context>

<pallas_src>
import numpy as np
import jax
import jax.numpy as jnp
from jax.experimental import pallas as pl
from jax.experimental.pallas import tpu as pltpu


def _round_up(v, m):
    return (v + m - 1) // m * m


def _mlp_emb_scaled_kernel(x_ref, imp_ref, sel_ref, w_ref, b_ref, o_ref):
    # x block: (tm_p, pack*in_c) -- `pack` consecutive nodes packed per row.
    # Broadcast per-node importance over each node's in_c lane group with a
    # tiny constant selector matmul (MXU has huge slack here), keeping the
    # VALU/XLU slots free.  The elementwise multiply is done in f32 so it is
    # valid on v5e's f32-only VPU; the MXU operand dtype follows w_ref.dtype.
    scale = jnp.dot(imp_ref[...].astype(jnp.float32), sel_ref[...],
                    preferred_element_type=jnp.float32)
    xs = (x_ref[...].astype(jnp.float32) * scale).astype(w_ref.dtype)
    acc = jnp.dot(xs, w_ref[...], preferred_element_type=jnp.float32)
    o_ref[...] = (acc + b_ref[...]).astype(o_ref.dtype)


def _mlp_emb_plain_kernel(x_ref, w_ref, b_ref, o_ref):
    # Specialized path: no importance stream, no VPU multiply.  No f32 upcast
    # when x and the weight are already the same (e.g. bf16) dtype.
    acc = jnp.dot(x_ref[...].astype(w_ref.dtype), w_ref[...],
                  preferred_element_type=jnp.float32)
    o_ref[...] = (acc + b_ref[...]).astype(o_ref.dtype)


def mlp_emb_forward(x, edge_index, w_t, b, edge_attr=None, x_importance=None, *,
                    tm=4096, out_dtype=None, mxu_dtype=None):
    """MLPEmb.forward.

    x:            (N, in_c)  node features (f32 or bf16).
    edge_index:   accepted & ignored (unused by the PyTorch forward).
    w_t:          (in_c, out_c)  Linear weight, pre-transposed from (out, in).
    b:            (out_c,)       Linear bias.
    edge_attr:    accepted & ignored.
    x_importance: (N, 1) or (N,) per-node scale, or None.
    tm:           row tile in nodes (sweepable).
    out_dtype:    output dtype (default: x.dtype).  bf16 halves the dominant
                  HBM write stream when downstream tolerates it.
    mxu_dtype:    MXU operand dtype.  Default: bf16 if x is bf16 else f32.
                  Force bf16 on v5e for fewer MXU passes (~1e-3 rel rounding).
    """
    del edge_index, edge_attr  # unused by MLPEmb.forward
    N, in_c = x.shape
    out_c_orig = w_t.shape[1]
    out_dtype = x.dtype if out_dtype is None else out_dtype
    if mxu_dtype is None:
        mxu_dtype = jnp.bfloat16 if x.dtype == jnp.bfloat16 else jnp.float32

    # --- lane packing --------------------------------------------------------
    # Minimal `pack` such that both the x block (pack*in_c lanes) and the output
    # block (pack*out_c lanes) are multiples of 128 -> unmasked vld/vst.
    pack = 1
    for p in (2, 4, 8, 16):
        if (p * in_c) % 128 == 0 and (p * out_c_orig) % 128 == 0:
            pack = p
            break
    out_c = out_c_orig
    w_use, b_use = w_t, b
    if pack == 1 and out_c % 128 != 0:
        # Odd channel counts: at least keep the *output* stream lane-dense
        # (masked stores are the single biggest measured layout penalty).
        out_c = _round_up(out_c_orig, 128)
        w_use = jnp.pad(w_t, ((0, 0), (0, out_c - out_c_orig)))
        b_use = jnp.pad(b, (0, out_c - out_c_orig))

    # --- tail handling (no full-array pad/slice copies) -----------------------
    # Pad x by at most pack-1 rows so the packing reshape is valid (and up to
    # 8*pack rows only for tiny N so a single block never exceeds the array).
    # The last partial grid block is handled by Pallas: rows are independent,
    # so garbage read past the end only affects OOB output rows, and OOB
    # stores are masked.  NOTE: this invariant relies on per-row independence;
    # do not add cross-row reductions to the kernel without restoring padding.
    row_align = 8 * pack
    if x_importance is not None and x_importance.ndim == 1:
        x_importance = x_importance.reshape(-1, 1)
    n_pack = max(_round_up(N, pack), row_align)
    if n_pack != N:
        x = jnp.pad(x, ((0, n_pack - N), (0, 0)))
        if x_importance is not None:
            x_importance = jnp.pad(x_importance, ((0, n_pack - N), (0, 0)))
    rows_p = n_pack // pack

    # --- row tile -------------------------------------------------------------
    # Large tiles: this kernel is HBM-bound and at small tiles the per-step
    # grid overhead dominates the per-step DMA time.  tm_p is in packed rows,
    # a multiple of 8 sublanes, and never larger than the packed array.
    tm_p = max(8, (min(tm // pack, rows_p) // 8) * 8)
    grid = (pl.cdiv(rows_p, tm_p),)

    xp = x.reshape(rows_p, pack * in_c)                  # free row-major reshape
    if pack > 1:
        # Identical-block block-diagonal == kron(I_pack, W).
        wp = jnp.kron(jnp.eye(pack, dtype=w_use.dtype), w_use)
        bp = jnp.tile(b_use.reshape(1, out_c), (1, pack))
    else:
        wp = w_use
        bp = b_use.reshape(1, out_c)
    wp = wp.astype(mxu_dtype)          # small resident block; bf16 shrinks it
    bp = bp.astype(jnp.float32)        # added to the f32 accumulator

    x_spec = pl.BlockSpec((tm_p, pack * in_c), lambda i: (i, 0))
    w_spec = pl.BlockSpec((pack * in_c, pack * out_c), lambda i: (0, 0))
    b_spec = pl.BlockSpec((1, pack * out_c), lambda i: (0, 0))
    o_spec = pl.BlockSpec((tm_p, pack * out_c), lambda i: (i, 0))

    bytes_accessed = (xp.size * xp.dtype.itemsize
                      + wp.size * wp.dtype.itemsize
                      + bp.size * bp.dtype.itemsize
                      + rows_p * pack * out_c * np.dtype(out_dtype).itemsize)

    if x_importance is None:
        kernel = _mlp_emb_plain_kernel
        operands = (xp, wp, bp)
        in_specs = [x_spec, w_spec, b_spec]
    else:
        imp_p = x_importance.reshape(rows_p, pack)       # free reshape
        # Constant 0/1 selector: row g is 1 on lane group g (in_c lanes).
        sel = jnp.repeat(jnp.eye(pack, dtype=jnp.float32), in_c, axis=1)
        bytes_accessed += imp_p.size * imp_p.dtype.itemsize + sel.size * 4
        kernel = _mlp_emb_scaled_kernel
        operands = (xp, imp_p, sel, wp, bp)
        in_specs = [x_spec,
                    pl.BlockSpec((tm_p, pack), lambda i: (i, 0)),
                    pl.BlockSpec((pack, pack * in_c), lambda i: (0, 0)),
                    w_spec, b_spec]

    out = pl.pallas_call(
        kernel,
        out_shape=jax.ShapeDtypeStruct((rows_p, pack * out_c), out_dtype),
        grid=grid,
        in_specs=in_specs,
        out_specs=o_spec,
        compiler_params=pltpu.CompilerParams(
            dimension_semantics=("parallel",)),
        cost_estimate=pl.CostEstimate(
            flops=2 * rows_p * (pack * in_c) * (pack * out_c),
            transcendentals=0,
            bytes_accessed=int(bytes_accessed)),
    )(*operands)

    out = out.reshape(n_pack, out_c)                     # free reshape back
    if n_pack != N:
        out = out[:N]
    if out_c != out_c_orig:
        out = out[:, :out_c_orig]
    return out


def _ref_forward(x, w_t, b, x_importance):
    xf = x.astype(jnp.float32)
    if x_importance is not None:
        xf = xf * x_importance
    return xf @ w_t + b


if __name__ == "__main__":
    # Small deterministic problem.  num_layers=1 -> hidden_channels unused.
    N, in_channels, out_channels = 1000, 32, 64

    key = jax.random.PRNGKey(0)
    k_x, k_imp, k_w, k_b = jax.random.split(key, 4)

    x = jax.random.normal(k_x, (N, in_channels), dtype=jnp.float32)
    x_importance = jax.random.uniform(k_imp, (N, 1), dtype=jnp.float32)
    # Deterministic "Linear(in_channels, out_channels)" parameters.
    w = jax.random.normal(k_w, (out_channels, in_channels), dtype=jnp.float32) * 0.1
    b = jax.random.normal(k_b, (out_channels,), dtype=jnp.float32) * 0.1
    w_t = w.T                                     # (in_channels, out_channels)

    # edge_index is accepted but unused by the forward pass.
    edge_index = jnp.zeros((2, 8), dtype=jnp.int32)

    # 1) f32 transport, with importance.
    out = jax.block_until_ready(
        mlp_emb_forward(x, edge_index, w_t, b, x_importance=x_importance))
    ref = _ref_forward(x, w_t, b, x_importance)
    assert out.shape == (N, out_channels)
    assert jnp.allclose(out, ref, atol=1e-3, rtol=1e-3), "mismatch (f32 + importance)"

    # 2) x_importance=None specialized kernel.
    out_ni = jax.block_until_ready(mlp_emb_forward(x, edge_index, w_t, b))
    ref_ni = _ref_forward(x, w_t, b, None)
    assert jnp.allclose(out_ni, ref_ni, atol=1e-3, rtol=1e-3), "mismatch (no importance)"

    # 3) bf16 transport of x -> bf16 MXU operands (no f32 upcast), f32 output.
    x_bf16 = x.astype(jnp.bfloat16)
    out_bf = jax.block_until_ready(
        mlp_emb_forward(x_bf16, edge_index, w_t, b, x_importance=x_importance,
                        out_dtype=jnp.float32))
    ref_bf = _ref_forward(x_bf16, w_t, b, x_importance)
    assert jnp.allclose(out_bf, ref_bf, atol=1e-2, rtol=1e-2), "mismatch (bf16 transport)"

    # 4) N not a multiple of pack -> exercises the <=pack-1 row pad + cdiv tail.
    N2 = 1003
    x2 = jax.random.normal(k_x, (N2, in_channels), dtype=jnp.float32)
    imp2 = jax.random.uniform(k_imp, (N2, 1), dtype=jnp.float32)
    out2 = jax.block_until_ready(
        mlp_emb_forward(x2, edge_index, w_t, b, x_importance=imp2))
    ref2 = _ref_forward(x2, w_t, b, imp2)
    assert out2.shape == (N2, out_channels)
    assert jnp.allclose(out2, ref2, atol=1e-3, rtol=1e-3), "mismatch (tail N=1003)"

    # 5) bf16 output (halves the dominant write stream).
    out_bf_out = jax.block_until_ready(
        mlp_emb_forward(x, edge_index, w_t, b, x_importance=x_importance,
                        out_dtype=jnp.bfloat16))
    assert jnp.allclose(out_bf_out.astype(jnp.float32), ref,
                        atol=2e-2, rtol=2e-2), "mismatch (bf16 output)"

    print("KERNEL_OK")
</pallas_src>

<mosaic_0001>
module attributes {stable_mosaic.version = 11 : i64} {
  func.func @_mlp_emb_scaled_kernel(%arg0: i32, %arg1: memref<248x128xf32, #tpu.memory_space<vmem>>, %arg2: memref<248x4xf32, #tpu.memory_space<vmem>>, %arg3: memref<4x128xf32, #tpu.memory_space<vmem>>, %arg4: memref<128x256xf32, #tpu.memory_space<vmem>>, %arg5: memref<1x256xf32, #tpu.memory_space<vmem>>, %arg6: memref<248x256xf32, #tpu.memory_space<vmem>>) attributes {dimension_semantics = [#tpu.dimension_semantics<parallel>], iteration_bounds = array<i64: 2>, scalar_prefetch = 0 : i64, scratch_operands = 0 : i64, tpu.core_type = #tpu.core_type<tc>, window_params = [{transform_indices = @transform_0, window_bounds = array<i64: 248, 128>}, {transform_indices = @transform_1, window_bounds = array<i64: 248, 4>}, {pipeline_mode = #tpu.pipeline_mode<synchronous>, transform_indices = @transform_2, window_bounds = array<i64: 4, 128>}, {pipeline_mode = #tpu.pipeline_mode<synchronous>, transform_indices = @transform_3, window_bounds = array<i64: 128, 256>}, {pipeline_mode = #tpu.pipeline_mode<synchronous>, transform_indices = @transform_4, window_bounds = array<i64: 1, 256>}, {transform_indices = @transform_5, window_bounds = array<i64: 248, 256>}]} {
    %c0 = arith.constant 0 : index
    %c0_0 = arith.constant 0 : index
    %0 = vector.load %arg2[%c0, %c0_0] : memref<248x4xf32, #tpu.memory_space<vmem>>, vector<248x4xf32>
    %c0_1 = arith.constant 0 : index
    %c0_2 = arith.constant 0 : index
    %1 = vector.load %arg3[%c0_1, %c0_2] : memref<4x128xf32, #tpu.memory_space<vmem>>, vector<4x128xf32>
    %cst = arith.constant dense<0.000000e+00> : vector<248x128xf32>
    %2 = tpu.matmul %0, %1, %cst {dimension_numbers = #tpu.dot_dimension_numbers<[1], [0], [0], [1], [0, 0, 1, 1], [], []>} : vector<248x4xf32>, vector<4x128xf32>, vector<248x128xf32> -> vector<248x128xf32>
    %c0_3 = arith.constant 0 : index
    %c0_4 = arith.constant 0 : index
    %3 = vector.load %arg1[%c0_3, %c0_4] : memref<248x128xf32, #tpu.memory_space<vmem>>, vector<248x128xf32>
    %4 = arith.mulf %3, %2 : vector<248x128xf32>
    %c0_5 = arith.constant 0 : index
    %c0_6 = arith.constant 0 : index
    %5 = vector.load %arg4[%c0_5, %c0_6] : memref<128x256xf32, #tpu.memory_space<vmem>>, vector<128x256xf32>
    %cst_7 = arith.constant dense<0.000000e+00> : vector<248x256xf32>
    %6 = tpu.matmul %4, %5, %cst_7 {dimension_numbers = #tpu.dot_dimension_numbers<[1], [0], [0], [1], [0, 0, 1, 1], [], []>} : vector<248x128xf32>, vector<128x256xf32>, vector<248x256xf32> -> vector<248x256xf32>
    %c0_8 = arith.constant 0 : index
    %c0_9 = arith.constant 0 : index
    %7 = vector.load %arg5[%c0_8, %c0_9] : memref<1x256xf32, #tpu.memory_space<vmem>>, vector<1x256xf32>
    %8 = vector.broadcast %7 : vector<1x256xf32> to vector<248x256xf32>
    %9 = arith.addf %6, %8 : vector<248x256xf32>
    %c0_10 = arith.constant 0 : index
    %c0_11 = arith.constant 0 : index
    %10 = vector.load %arg6[%c0_10, %c0_11] : memref<248x256xf32, #tpu.memory_space<vmem>>, vector<248x256xf32>
    tpu.vector_store %arg6[%c0_10, %c0_11], %9 {strides = array<i32>} : memref<248x256xf32, #tpu.memory_space<vmem>>, vector<248x256xf32>,
    return
  }
  func.func @transform_0(%arg0: i32) -> (i32, i32) {
    %c0_i32 = arith.constant 0 : i32
    %c0_i32_0 = arith.constant 0 : i32
    return %arg0, %c0_i32 : i32, i32
  }
  func.func @transform_1(%arg0: i32) -> (i32, i32) {
    %c0_i32 = arith.constant 0 : i32
    %c0_i32_0 = arith.constant 0 : i32
    return %arg0, %c0_i32 : i32, i32
  }
  func.func @transform_2(%arg0: i32) -> (i32, i32) {
    %c0_i32 = arith.constant 0 : i32
    %c0_i32_0 = arith.constant 0 : i32
    %c0_i32_1 = arith.constant 0 : i32
    return %c0_i32, %c0_i32_0 : i32, i32
  }
  func.func @transform_3(%arg0: i32) -> (i32, i32) {
    %c0_i32 = arith.constant 0 : i32
    %c0_i32_0 = arith.constant 0 : i32
    %c0_i32_1 = arith.constant 0 : i32
    return %c0_i32, %c0_i32_0 : i32, i32
  }
  func.func @transform_4(%arg0: i32) -> (i32, i32) {
    %c0_i32 = arith.constant 0 : i32
    %c0_i32_0 = arith.constant 0 : i32
    %c0_i32_1 = arith.constant 0 : i32
    return %c0_i32, %c0_i32_0 : i32, i32
  }
  func.func @transform_5(%arg0: i32) -> (i32, i32) {
    %c0_i32 = arith.constant 0 : i32
    %c0_i32_0 = arith.constant 0 : i32
    return %arg0, %c0_i32 : i32, i32
  }
}

</mosaic_0001>

<llo_original>
// kernel: tpu_custom_call.1
$region0: #{tpu_custom_call.1}
  #allocation0 [shape = 'u32[]', space=smem, size = 0x4, offset = 0x4, fixed_abs, tag = 'smem constant byte address 0x4 - core index']
  #allocation1 [shape = 'u32[72,128]{1,0:T(1,128)}', space=vmem, size = 0x9000, scoped, tag = 'internal scratch']
  %s0 = inlined_call_operand.vmem [shape: f32[250,128], index: 0, kind: input, shape index: {}]
  %s1 = inlined_call_operand.vmem [shape: f32[250,4], index: 1, kind: input, shape index: {}]
  %s2 = inlined_call_operand.vmem [shape: f32[4,128], index: 2, kind: input, shape index: {}]
  %s3 = inlined_call_operand.hbm [shape: f32[128,256], index: 3, kind: input, shape index: {}]
  %s4 = inlined_call_operand.vmem [shape: f32[1,256], index: 4, kind: input, shape index: {}]
  %s5 = inlined_call_operand.hbm [shape: f32[250,256], index: 5, kind: output, shape index: {}]
  %s6 = sld [smem:[#allocation0]]
  $region57: #{tpu_custom_call.1} parent=0
    _
  %s8 = ssub.s32 1, %s6
  %s9 = scalar_select 0, %s8, %s6
  $region1: #{tpu_custom_call.1} parent=0
    #allocation2 [shape = 'u8[131072]{0}', space=vmem, size = 0x20000, scoped, tag = 'input window, operand 3, single buffered']
    #allocation3 [shape = 's32[2]{0}', space=sflag, size = 0x8, scoped, tag = 'scoped memory for tpu_custom_call.1']
    #allocation4 [shape = 's32[2]{0}', space=sflag, size = 0x8, scoped, tag = 'scoped memory for tpu_custom_call.1']
    #allocation5 [shape = 'u8[507904]{0}', space=vmem, size = 0x7c000, scoped, tag = 'output window, operand 0']
    %10 = vsyncpa [#allocation3], 0
    %11 = vsyncpa [#allocation4], 0
    %s12 = scalar_lea.sflag [#allocation4], 1
    %13 = vsyncpa %s12, 0
    loop: start=0, step=1, limit=4
    $region2: #{tpu_custom_call.1} parent=1 // loop_pre_header
      _
    $region3: #{tpu_custom_call.1} parent=1 // loop_header
      %s15 = sphi 0, %s19
      %p16 = scmp.ge.s32.totalorder %s15, 4
      %s25 = sphi 0, %s27
      %s28 = sphi 0, %s25
      %s29 = sphi 0, %s28
      %s45 = sphi 0, %s29
      %s51 = sphi 0, %s53
      %s54 = sphi 0, %s51
      %s55 = sphi 0, %s54
      %s71 = sphi 0, %s55
      %s75 = sphi 0, %s75
      %s77 = sphi 0, %s75
      %s78 = sphi 0, %s77
      %s92 = sphi 0, %s78
      %s96 = sphi 0, %s96
      %s98 = sphi 0, %s96
      %s99 = sphi 0, %s98
      %s113 = sphi 0, %s99
      %s117 = sphi 0, %s117
      %s119 = sphi 0, %s117
      %s120 = sphi 0, %s119
      %s134 = sphi 0, %s120
      %s140 = sphi 0, %s142
      %s143 = sphi 0, %s140
      %s144 = sphi 0, %s143
      %s160 = sphi 0, %s144
    $region4: #{tpu_custom_call.1} parent=1 // loop_header_branch
      %18 = sbr.rel (%p16) target = $region8
    $region5: #{tpu_custom_call.1} parent=1 // loop_body
      %s20 = ssub.s32 %s15, 1
      %s21 = ssub.s32 %s15, 2
      %s22 = sadd.s32 %s15, 1
      %s23 = ssub.s32 %s15, %s22
      %p24 = scmp.eq.s32.totalorder %s23, 0
      %s26 = sadd.s32 %s25, 1
      %s27 = scalar_select %p24, %s25, %s26
      %p30 = pneg %p24
      %p31 = scmp.eq.s32.totalorder %s15, 1
      %p32 = por %p30, %p31
      %p33 = scmp.ne.s32.totalorder %s25, %s28
      %p34 = scmp.eq.s32.totalorder %s15, 0
      %p35 = por %p33, %p34
      %p36 = scmp.ne.s32.totalorder %s25, %s28
      %p37 = scmp.eq.s32.totalorder %s20, 1
      %p38 = por %p36, %p37
      %p39 = scmp.ne.s32.totalorder %s28, %s29
      %p40 = scmp.eq.s32.totalorder %s20, 0
      %p41 = por %p39, %p40
      %p42 = scmp.ne.s32.totalorder %s28, %s29
      %p43 = scmp.eq.s32.totalorder %s21, 1
      %p44 = por %p42, %p43
      %p46 = scmp.ne.s32.totalorder %s29, %s45
      %p47 = scmp.eq.s32.totalorder %s21, 0
      %p48 = por %p46, %p47
      %s49 = ssub.s32 %s15, %s22
      %p50 = scmp.eq.s32.totalorder %s49, 0
      %s52 = sadd.s32 %s51, 1
      %s53 = scalar_select %p50, %s51, %s52
      %p56 = pneg %p50
      %p57 = scmp.eq.s32.totalorder %s15, 1
      %p58 = por %p56, %p57
      %p59 = scmp.ne.s32.totalorder %s51, %s54
      %p60 = scmp.eq.s32.totalorder %s15, 0
      %p61 = por %p59, %p60
      %p62 = scmp.ne.s32.totalorder %s51, %s54
      %p63 = scmp.eq.s32.totalorder %s20, 1
      %p64 = por %p62, %p63
      %p65 = scmp.ne.s32.totalorder %s54, %s55
      %p66 = scmp.eq.s32.totalorder %s20, 0
      %p67 = por %p65, %p66
      %p68 = scmp.ne.s32.totalorder %s54, %s55
      %p69 = scmp.eq.s32.totalorder %s21, 1
      %p70 = por %p68, %p69
      %p72 = scmp.ne.s32.totalorder %s55, %s71
      %p73 = scmp.eq.s32.totalorder %s21, 0
      %p74 = por %p72, %p73
      %s76 = sadd.s32 %s75, 1
      %p79 = scmp.eq.s32.totalorder %s15, 1
      %p80 = scmp.ne.s32.totalorder %s75, %s77
      %p81 = scmp.eq.s32.totalorder %s15, 0
      %p82 = por %p80, %p81
      %p83 = scmp.ne.s32.totalorder %s75, %s77
      %p84 = scmp.eq.s32.totalorder %s20, 1
      %p85 = por %p83, %p84
      %p86 = scmp.ne.s32.totalorder %s77, %s78
      %p87 = scmp.eq.s32.totalorder %s20, 0
      %p88 = por %p86, %p87
      %p89 = scmp.ne.s32.totalorder %s77, %s78
      %p90 = scmp.eq.s32.totalorder %s21, 1
      %p91 = por %p89, %p90
      %p93 = scmp.ne.s32.totalorder %s78, %s92
      %p94 = scmp.eq.s32.totalorder %s21, 0
      %p95 = por %p93, %p94
      %s97 = sadd.s32 %s96, 1
      %p100 = scmp.eq.s32.totalorder %s15, 1
      %p101 = scmp.ne.s32.totalorder %s96, %s98
      %p102 = scmp.eq.s32.totalorder %s15, 0
      %p103 = por %p101, %p102
      %p104 = scmp.ne.s32.totalorder %s96, %s98
      %p105 = scmp.eq.s32.totalorder %s20, 1
      %p106 = por %p104, %p105
      %p107 = scmp.ne.s32.totalorder %s98, %s99
      %p108 = scmp.eq.s32.totalorder %s20, 0
      %p109 = por %p107, %p108
      %p110 = scmp.ne.s32.totalorder %s98, %s99
      %p111 = scmp.eq.s32.totalorder %s21, 1
      %p112 = por %p110, %p111
      %p114 = scmp.ne.s32.totalorder %s99, %s113
      %p115 = scmp.eq.s32.totalorder %s21, 0
      %p116 = por %p114, %p115
      %s118 = sadd.s32 %s117, 1
      %p121 = scmp.eq.s32.totalorder %s15, 1
      %p122 = scmp.ne.s32.totalorder %s117, %s119
      %p123 = scmp.eq.s32.totalorder %s15, 0
      %p124 = por %p122, %p123
      %p125 = scmp.ne.s32.totalorder %s117, %s119
      %p126 = scmp.eq.s32.totalorder %s20, 1
      %p127 = por %p125, %p126
      %p128 = scmp.ne.s32.totalorder %s119, %s120
      %p129 = scmp.eq.s32.totalorder %s20, 0
      %p130 = por %p128, %p129
      %p131 = scmp.ne.s32.totalorder %s119, %s120
      %p132 = scmp.eq.s32.totalorder %s21, 1
      %p133 = por %p131, %p132
      %p135 = scmp.ne.s32.totalorder %s120, %s134
      %p136 = scmp.eq.s32.totalorder %s21, 0
      %p137 = por %p135, %p136
      %s138 = ssub.s32 %s15, %s22
      %p139 = scmp.eq.s32.totalorder %s138, 0
      %s141 = sadd.s32 %s140, 1
      %s142 = scalar_select %p139, %s140, %s141
      %p145 = pneg %p139
      %p146 = scmp.eq.s32.totalorder %s15, 1
      %p147 = por %p145, %p146
      %p148 = scmp.ne.s32.totalorder %s140, %s143
      %p149 = scmp.eq.s32.totalorder %s15, 0
      %p150 = por %p148, %p149
      %p151 = scmp.ne.s32.totalorder %s140, %s143
      %p152 = scmp.eq.s32.totalorder %s20, 1
      %p153 = por %p151, %p152
      %p154 = scmp.ne.s32.totalorder %s143, %s144
      %p155 = scmp.eq.s32.totalorder %s20, 0
      %p156 = por %p154, %p155
      %p157 = scmp.ne.s32.totalorder %s143, %s144
      %p158 = scmp.eq.s32.totalorder %s21, 1
      %p159 = por %p157, %p158
      %p161 = scmp.ne.s32.totalorder %s144, %s160
      %p162 = scmp.eq.s32.totalorder %s21, 0
      %p163 = por %p161, %p162
      %p164 = scmp.le.s32.totalorder 1, %s15
      %p165 = scmp.lt.s32.totalorder %s15, 3
      %p166 = pnand %p164, %p165
      %p167 = pneg %p166
      // Predicated region
      $region9: #{tpu_custom_call.1} parent=5 // pred_check
        _
      $region10: #{tpu_custom_call.1} parent=5 // pred_check_branch
        %169 = sbr.rel (%p166) target = $region12
      $region11: #{tpu_custom_call.1} parent=5 // pred_region
        %s170 = ssub.s32 %s15, 1
        // Predicated region
        $region13: #{tpu_custom_call.1} parent=11 // pred_check
          %p171 = pneg %p88
        $region14: #{tpu_custom_call.1} parent=11 // pred_check_branch
          %173 = sbr.rel (%p171) target = $region16
        $region15: #{tpu_custom_call.1} parent=11 // pred_region
          _
        $region16: #{tpu_custom_call.1} parent=11 // pred_fallthru
          _
        // Predicated region
        $region17: #{tpu_custom_call.1} parent=11 // pred_check
          %p174 = pneg %p109
        $region18: #{tpu_custom_call.1} parent=11 // pred_check_branch
          %176 = sbr.rel (%p174) target = $region20
        $region19: #{tpu_custom_call.1} parent=11 // pred_region
          %178 = vsyncadd [#allocation3], 0
          %s179 = sshll.u32 %s3, 4
          %s180 = int_to_ptr.hbm [resolvable:$true] %s179
          %s181 = sshll.u32 [#allocation2], 4
          %s182 = int_to_ptr.vmem [resolvable:$true] %s181
          %187 = dma.hbm_to_vmem [thread:$0]  %s180, 4096, %s182, [#allocation3], 256, 256, 16
        $region20: #{tpu_custom_call.1} parent=11 // pred_fallthru
          _
        // Predicated region
        $region21: #{tpu_custom_call.1} parent=11 // pred_check
          %p188 = pneg %p130
        $region22: #{tpu_custom_call.1} parent=11 // pred_check_branch
          %190 = sbr.rel (%p188) target = $region24
        $region23: #{tpu_custom_call.1} parent=11 // pred_region
          _
        $region24: #{tpu_custom_call.1} parent=11 // pred_fallthru
          _
      $region12: #{tpu_custom_call.1} parent=5 // pred_fallthru
        _
      %p191 = scmp.lt.s32.totalorder %s15, 2
      // Predicated region
      $region25: #{tpu_custom_call.1} parent=5 // pred_check
        %p192 = pneg %p191
      $region26: #{tpu_custom_call.1} parent=5 // pred_check_branch
        %194 = sbr.rel (%p192) target = $region28
      $region27: #{tpu_custom_call.1} parent=5 // pred_region
        // Predicated region
        $region29: #{tpu_custom_call.1} parent=27 // pred_check
          %p195 = pneg %p35
        $region30: #{tpu_custom_call.1} parent=27 // pred_check_branch
          %197 = sbr.rel (%p195) target = $region32
        $region31: #{tpu_custom_call.1} parent=27 // pred_region
          %s198 = smul.u32 31, %s15
          %s199 = ssub.s32 32, %s198
          %p200 = scmp.lt.s32.totalorder %s199, 31
          %s201 = scalar_select %p200, %s199, 31
          %s202 = smul.u32 8, %s201
          %p203 = scmp.lt.s32.totalorder %s198, 31
          %s204 = scalar_select %p203, %s198, 31
          %s205 = smul.addr %s204, 8
          %s206 = scalar_lea.vmem %s0, %s205
          %s207 = smul.u32 31, %s15
          %s208 = ssub.s32 32, %s207
          %p209 = scmp.lt.s32.totalorder %s208, 31
          %s210 = scalar_select %p209, %s208, 31
          %s211 = smul.u32 8, %s210
        $region32: #{tpu_custom_call.1} parent=27 // pred_fallthru
          _
        // Predicated region
        $region33: #{tpu_custom_call.1} parent=27 // pred_check
          %p212 = pneg %p61
        $region34: #{tpu_custom_call.1} parent=27 // pred_check_branch
          %214 = sbr.rel (%p212) target = $region36
        $region35: #{tpu_custom_call.1} parent=27 // pred_region
          %s215 = smul.u32 31, %s15
          %s216 = ssub.s32 32, %s215
          %p217 = scmp.lt.s32.totalorder %s216, 31
          %s218 = scalar_select %p217, %s216, 31
          %s219 = smul.u32 8, %s218
          %p220 = scmp.lt.s32.totalorder %s215, 31
          %s221 = scalar_select %p220, %s215, 31
          %s222 = smul.addr %s221, 8
          %s223 = scalar_lea.vmem %s1, %s222
          %s224 = smul.u32 31, %s15
          %s225 = ssub.s32 32, %s224
          %p226 = scmp.lt.s32.totalorder %s225, 31
          %s227 = scalar_select %p226, %s225, 31
          %s228 = smul.u32 8, %s227
        $region36: #{tpu_custom_call.1} parent=27 // pred_fallthru
          _
      $region28: #{tpu_custom_call.1} parent=5 // pred_fallthru
        _
      %p229 = scmp.le.s32.totalorder 1, %s15
      %p230 = scmp.lt.s32.totalorder %s15, 3
      %p231 = pnand %p229, %p230
      %p232 = pneg %p231
      // Predicated region
      $region37: #{tpu_custom_call.1} parent=5 // pred_check
        _
      $region38: #{tpu_custom_call.1} parent=5 // pred_check_branch
        %234 = sbr.rel (%p231) target = $region40
      $region39: #{tpu_custom_call.1} parent=5 // pred_region
        %s235 = ssub.s32 %s15, 1
        // Predicated region
        $region41: #{tpu_custom_call.1} parent=39 // pred_check
          %p236 = pneg %p109
        $region42: #{tpu_custom_call.1} parent=39 // pred_check_branch
          %238 = sbr.rel (%p236) target = $region44
        $region43: #{tpu_custom_call.1} parent=39 // pred_region
          %240 = dma.done [#allocation3], 4096
        $region44: #{tpu_custom_call.1} parent=39 // pred_fallthru
          _
        %s241 = smul.u32 31, %s20
        %s242 = ssub.s32 32, %s241
        %p243 = scmp.lt.s32.totalorder %s242, 31
        %s244 = scalar_select %p243, %s242, 31
        %s245 = smul.u32 8, %s244
        %p246 = scmp.lt.s32.totalorder %s241, 31
        %s247 = scalar_select %p246, %s241, 31
        %s248 = smul.addr %s247, 8
        %s249 = scalar_lea.vmem %s0, %s248
        %p250 = pneg %p41
        %p251 = pneg %p38
        %s252 = smul.u32 31, %s20
        %s253 = ssub.s32 32, %s252
        %p254 = scmp.lt.s32.totalorder %s253, 31
        %s255 = scalar_select %p254, %s253, 31
        %s256 = smul.u32 8, %s255
        %p257 = scmp.lt.s32.totalorder %s252, 31
        %s258 = scalar_select %p257, %s252, 31
        %s259 = smul.addr %s258, 8
        %s260 = scalar_lea.vmem %s1, %s259
        %p261 = pneg %p67
        %p262 = pneg %p64
        %p263 = pneg %p88
        %p264 = pneg %p85
        %p265 = pneg %p109
        %p266 = pneg %p106
        %p267 = pneg %p130
        %p268 = pneg %p127
        %p269 = pneg %p156
        %p270 = pneg %p153
        %s271 = sand.u32 %s143, 1
        %s272 = scalar_lea.sflag [#allocation4], %s271
        %s273 = sand.u32 %s143, 1
        %s274 = smul.addr %s273, 496
        %s275 = scalar_lea.vmem [#allocation5], %s274
        %s276 = smul.u32 31, %s20
        %s277 = ssub.s32 32, %s276
        %p278 = scmp.lt.s32.totalorder %s277, 31
        %s279 = scalar_select %p278, %s277, 31
        %s280 = smul.u32 8, %s279
        %p281 = scmp.lt.s32.totalorder %s276, 31
        %s282 = scalar_select %p281, %s276, 31
        %s283 = smul.addr %s282, 8
        %s284 = scalar_lea.vmem %s0, %s283
        %s285 = smul.u32 31, %s20
        %s286 = ssub.s32 32, %s285
        %p287 = scmp.lt.s32.totalorder %s286, 31
        %s288 = scalar_select %p287, %s286, 31
        %s289 = smul.u32 8, %s288
        %s290 = smul.u32 31, %s20
        %s291 = ssub.s32 32, %s290
        %p292 = scmp.lt.s32.totalorder %s291, 31
        %s293 = scalar_select %p292, %s291, 31
        %s294 = smul.u32 8, %s293
        %p295 = scmp.lt.s32.totalorder %s290, 31
        %s296 = scalar_select %p295, %s290, 31
        %s297 = smul.addr %s296, 8
        %s298 = scalar_lea.vmem %s1, %s297
        %s299 = smul.u32 31, %s20
        %s300 = ssub.s32 32, %s299
        %p301 = scmp.lt.s32.totalorder %s300, 31
        %s302 = scalar_select %p301, %s300, 31
        %s303 = smul.u32 8, %s302
        %s304 = smul.u32 31, %s20
        %s305 = ssub.s32 32, %s304
        %p306 = scmp.lt.s32.totalorder %s305, 31
        %s307 = scalar_select %p306, %s305, 31
        %s308 = smul.u32 8, %s307
        %s309 = smul.u32 %s308, 2
        %v310 = vld [vmem:[%s298] sm:$0xff]
        %v311 = vld [vmem:[%s298 + $0x8] sm:$0xff]
        %v312 = vld [vmem:[%s298 + $0x10] sm:$0xff]
        %v313 = vld [vmem:[%s298 + $0x18] sm:$0xff]
        %v314 = vld [vmem:[%s298 + $0x20] sm:$0xff]
        %v315 = vld [vmem:[%s298 + $0x28] sm:$0xff]
        %v316 = vld [vmem:[%s298 + $0x30] sm:$0xff]
        %v317 = vld [vmem:[%s298 + $0x38] sm:$0xff]
        %v318 = vld [vmem:[%s298 + $0x40] sm:$0xff]
        %v319 = vld [vmem:[%s298 + $0x48] sm:$0xff]
        %v320 = vld [vmem:[%s298 + $0x50] sm:$0xff]
        %v321 = vld [vmem:[%s298 + $0x58] sm:$0xff]
        %v322 = vld [vmem:[%s298 + $0x60] sm:$0xff]
        %v323 = vld [vmem:[%s298 + $0x68] sm:$0xff]
        %v324 = vld [vmem:[%s298 + $0x70] sm:$0xff]
        %v325 = vld [vmem:[%s298 + $0x78] sm:$0xff]
        %v326 = vld [vmem:[%s298 + $0x80] sm:$0xff]
        %v327 = vld [vmem:[%s298 + $0x88] sm:$0xff]
        %v328 = vld [vmem:[%s298 + $0x90] sm:$0xff]
        %v329 = vld [vmem:[%s298 + $0x98] sm:$0xff]
        %v330 = vld [vmem:[%s298 + $0xa0] sm:$0xff]
        %v331 = vld [vmem:[%s298 + $0xa8] sm:$0xff]
        %v332 = vld [vmem:[%s298 + $0xb0] sm:$0xff]
        %v333 = vld [vmem:[%s298 + $0xb8] sm:$0xff]
        %v334 = vld [vmem:[%s298 + $0xc0] sm:$0xff]
        %v335 = vld [vmem:[%s298 + $0xc8] sm:$0xff]
        %v336 = vld [vmem:[%s298 + $0xd0] sm:$0xff]
        %v337 = vld [vmem:[%s298 + $0xd8] sm:$0xff]
        %v338 = vld [vmem:[%s298 + $0xe0] sm:$0xff]
        %v339 = vld [vmem:[%s298 + $0xe8] sm:$0xff]
        %v340 = vld [vmem:[%s298 + $0xf0] sm:$0xff]
        %v341 = vld [vmem:[%s2] sm:$0xf]
        %vm342 = vcmask 31744
        %v344 = vsel %vm342, %v310, 0
        %v347 = vsel %vm342, %v311, 0
        %v350 = vsel %vm342, %v312, 0
        %v353 = vsel %vm342, %v313, 0
        %v356 = vsel %vm342, %v314, 0
        %v359 = vsel %vm342, %v315, 0
        %v362 = vsel %vm342, %v316, 0
        %v365 = vsel %vm342, %v317, 0
        %v368 = vsel %vm342, %v318, 0
        %v371 = vsel %vm342, %v319, 0
        %v374 = vsel %vm342, %v320, 0
        %v377 = vsel %vm342, %v321, 0
        %v380 = vsel %vm342, %v322, 0
        %v383 = vsel %vm342, %v323, 0
        %v386 = vsel %vm342, %v324, 0
        %v389 = vsel %vm342, %v325, 0
        %v392 = vsel %vm342, %v326, 0
        %v395 = vsel %vm342, %v327, 0
        %v398 = vsel %vm342, %v328, 0
        %v401 = vsel %vm342, %v329, 0
        %v404 = vsel %vm342, %v330, 0
        %v407 = vsel %vm342, %v331, 0
        %v410 = vsel %vm342, %v332, 0
        %v413 = vsel %vm342, %v333, 0
        %v416 = vsel %vm342, %v334, 0
        %v419 = vsel %vm342, %v335, 0
        %v422 = vsel %vm342, %v336, 0
        %v425 = vsel %vm342, %v337, 0
        %v428 = vsel %vm342, %v338, 0
        %v431 = vsel %vm342, %v339, 0
        %v434 = vsel %vm342, %v340, 0
        %vm436 = vcmask 1043456
        %v438 = vsel %vm436, %v341, 0
        %440 = vmatpush.msra.mxu0 0.0
        %441 = vmatpush.msra.mxu0 0.0
        %442 = vmatpush.msra.mxu0 0.0
        %443 = vmatpush.msra.mxu0 0.0
        %444 = vmatpush.msra.mxu0 0.0
        %445 = vmatpush.msra.mxu0 0.0
        %446 = vmatpush.msra.mxu0 0.0
        %447 = vmatpush.msra.mxu0 0.0
        %448 = vmatpush.msra.mxu0 0.0
        %449 = vmatpush.msra.mxu0 0.0
        %450 = vmatpush.msra.mxu0 0.0
        %451 = vmatpush.msra.mxu0 0.0
        %452 = vmatpush.msra.mxu0 0.0
        %453 = vmatpush.msra.mxu0 0.0
        %454 = vmatpush.msra.mxu0 0.0
        %455 = vmatpush.msra.mxu0 %v438
        %456 = vmatmul.f32.gmra.mxu0 %v344
        %v457 = vpop.f32.mrf.mxu0
        %v458 = vadd.f32 0.0, %v457
        %459 = vmatmul.f32.gmra.mxu0 %v347
        %v460 = vpop.f32.mrf.mxu0
        %v461 = vadd.f32 0.0, %v460
        %462 = vmatmul.f32.gmra.mxu0 %v350
        %v463 = vpop.f32.mrf.mxu0
        %v464 = vadd.f32 0.0, %v463
        %465 = vmatmul.f32.gmra.mxu0 %v353
        %v466 = vpop.f32.mrf.mxu0
        %v467 = vadd.f32 0.0, %v466
        %468 = vmatmul.f32.gmra.mxu0 %v356
        %v469 = vpop.f32.mrf.mxu0
        %v470 = vadd.f32 0.0, %v469
        %471 = vmatmul.f32.gmra.mxu0 %v359
        %v472 = vpop.f32.mrf.mxu0
        %v473 = vadd.f32 0.0, %v472
        %474 = vmatmul.f32.gmra.mxu0 %v362
        %v475 = vpop.f32.mrf.mxu0
        %v476 = vadd.f32 0.0, %v475
        %477 = vmatmul.f32.gmra.mxu0 %v365
        %v478 = vpop.f32.mrf.mxu0
        %v479 = vadd.f32 0.0, %v478
        %480 = vmatmul.f32.gmra.mxu0 %v368
        %v481 = vpop.f32.mrf.mxu0
        %v482 = vadd.f32 0.0, %v481
        %483 = vmatmul.f32.gmra.mxu0 %v371
        %v484 = vpop.f32.mrf.mxu0
        %v485 = vadd.f32 0.0, %v484
        %486 = vmatmul.f32.gmra.mxu0 %v374
        %v487 = vpop.f32.mrf.mxu0
        %v488 = vadd.f32 0.0, %v487
        %489 = vmatmul.f32.gmra.mxu0 %v377
        %v490 = vpop.f32.mrf.mxu0
        %v491 = vadd.f32 0.0, %v490
        %492 = vmatmul.f32.gmra.mxu0 %v380
        %v493 = vpop.f32.mrf.mxu0
        %v494 = vadd.f32 0.0, %v493
        %495 = vmatmul.f32.gmra.mxu0 %v383
        %v496 = vpop.f32.mrf.mxu0
        %v497 = vadd.f32 0.0, %v496
        %498 = vmatmul.f32.gmra.mxu0 %v386
        %v499 = vpop.f32.mrf.mxu0
        %v500 = vadd.f32 0.0, %v499
        %501 = vmatmul.f32.gmra.mxu0 %v389
        %v502 = vpop.f32.mrf.mxu0
        %v503 = vadd.f32 0.0, %v502
        %504 = vmatmul.f32.gmra.mxu0 %v392
        %v505 = vpop.f32.mrf.mxu0
        %v506 = vadd.f32 0.0, %v505
        %507 = vmatmul.f32.gmra.mxu0 %v395
        %v508 = vpop.f32.mrf.mxu0
        %v509 = vadd.f32 0.0, %v508
        %510 = vmatmul.f32.gmra.mxu0 %v398
        %v511 = vpop.f32.mrf.mxu0
        %v512 = vadd.f32 0.0, %v511
        %513 = vmatmul.f32.gmra.mxu0 %v401
        %v514 = vpop.f32.mrf.mxu0
        %v515 = vadd.f32 0.0, %v514
        %516 = vmatmul.f32.gmra.mxu0 %v404
        %v517 = vpop.f32.mrf.mxu0
        %v518 = vadd.f32 0.0, %v517
        %519 = vmatmul.f32.gmra.mxu0 %v407
        %v520 = vpop.f32.mrf.mxu0
        %v521 = vadd.f32 0.0, %v520
        %522 = vmatmul.f32.gmra.mxu0 %v410
        %v523 = vpop.f32.mrf.mxu0
        %v524 = vadd.f32 0.0, %v523
        %525 = vmatmul.f32.gmra.mxu0 %v413
        %v526 = vpop.f32.mrf.mxu0
        %v527 = vadd.f32 0.0, %v526
        %528 = vmatmul.f32.gmra.mxu0 %v416
        %v529 = vpop.f32.mrf.mxu0
        %v530 = vadd.f32 0.0, %v529
        %531 = vmatmul.f32.gmra.mxu0 %v419
        %v532 = vpop.f32.mrf.mxu0
        %v533 = vadd.f32 0.0, %v532
        %534 = vmatmul.f32.gmra.mxu0 %v422
        %v535 = vpop.f32.mrf.mxu0
        %v536 = vadd.f32 0.0, %v535
        %537 = vmatmul.f32.gmra.mxu0 %v425
        %v538 = vpop.f32.mrf.mxu0
        %v539 = vadd.f32 0.0, %v538
        %540 = vmatmul.f32.gmra.mxu0 %v428
        %v541 = vpop.f32.mrf.mxu0
        %v542 = vadd.f32 0.0, %v541
        %543 = vmatmul.f32.gmra.mxu0 %v431
        %v544 = vpop.f32.mrf.mxu0
        %v545 = vadd.f32 0.0, %v544
        %546 = vmatmul.f32.gmra.mxu0 %v434
        %v547 = vpop.f32.mrf.mxu0
        %v548 = vadd.f32 0.0, %v547
        %549 = vdwg.mxu0
        %v550 = vld [vmem:[%s284] sm:$0xff]
        %v551 = vld [vmem:[%s284 + $0x8] sm:$0xff]
        %v552 = vld [vmem:[%s284 + $0x10] sm:$0xff]
        %v553 = vld [vmem:[%s284 + $0x18] sm:$0xff]
        %v554 = vld [vmem:[%s284 + $0x20] sm:$0xff]
        %v555 = vld [vmem:[%s284 + $0x28] sm:$0xff]
        %v556 = vld [vmem:[%s284 + $0x30] sm:$0xff]
        %v557 = vld [vmem:[%s284 + $0x38] sm:$0xff]
        %v558 = vld [vmem:[%s284 + $0x40] sm:$0xff]
        %v559 = vld [vmem:[%s284 + $0x48] sm:$0xff]
        %v560 = vld [vmem:[%s284 + $0x50] sm:$0xff]
        %v561 = vld [vmem:[%s284 + $0x58] sm:$0xff]
        %v562 = vld [vmem:[%s284 + $0x60] sm:$0xff]
        %v563 = vld [vmem:[%s284 + $0x68] sm:$0xff]
        %v564 = vld [vmem:[%s284 + $0x70] sm:$0xff]
        %v565 = vld [vmem:[%s284 + $0x78] sm:$0xff]
        %v566 = vld [vmem:[%s284 + $0x80] sm:$0xff]
        %v567 = vld [vmem:[%s284 + $0x88] sm:$0xff]
        %v568 = vld [vmem:[%s284 + $0x90] sm:$0xff]
        %v569 = vld [vmem:[%s284 + $0x98] sm:$0xff]
        %v570 = vld [vmem:[%s284 + $0xa0] sm:$0xff]
        %v571 = vld [vmem:[%s284 + $0xa8] sm:$0xff]
        %v572 = vld [vmem:[%s284 + $0xb0] sm:$0xff]
        %v573 = vld [vmem:[%s284 + $0xb8] sm:$0xff]
        %v574 = vld [vmem:[%s284 + $0xc0] sm:$0xff]
        %v575 = vld [vmem:[%s284 + $0xc8] sm:$0xff]
        %v576 = vld [vmem:[%s284 + $0xd0] sm:$0xff]
        %v577 = vld [vmem:[%s284 + $0xd8] sm:$0xff]
        %v578 = vld [vmem:[%s284 + $0xe0] sm:$0xff]
        %v579 = vld [vmem:[%s284 + $0xe8] sm:$0xff]
        %v580 = vld [vmem:[%s284 + $0xf0] sm:$0xff]
        %v581 = vmul.f32 %v550, %v458
        %v582 = vmul.f32 %v551, %v461
        %v583 = vmul.f32 %v552, %v464
        %v584 = vmul.f32 %v553, %v467
        %v585 = vmul.f32 %v554, %v470
        %v586 = vmul.f32 %v555, %v473
        %v587 = vmul.f32 %v556, %v476
        %v588 = vmul.f32 %v557, %v479
        %v589 = vmul.f32 %v558, %v482
        %v590 = vmul.f32 %v559, %v485
        %v591 = vmul.f32 %v560, %v488
        %v592 = vmul.f32 %v561, %v491
        %v593 = vmul.f32 %v562, %v494
        %v594 = vmul.f32 %v563, %v497
        %v595 = vmul.f32 %v564, %v500
        %v596 = vmul.f32 %v565, %v503
        %v597 = vmul.f32 %v566, %v506
        %v598 = vmul.f32 %v567, %v509
        %v599 = vmul.f32 %v568, %v512
        %v600 = vmul.f32 %v569, %v515
        %v601 = vmul.f32 %v570, %v518
        %v602 = vmul.f32 %v571, %v521
        %v603 = vmul.f32 %v572, %v524
        %v604 = vmul.f32 %v573, %v527
        %v605 = vmul.f32 %v574, %v530
        %v606 = vmul.f32 %v575, %v533
        %v607 = vmul.f32 %v576, %v536
        %v608 = vmul.f32 %v577, %v539
        %v609 = vmul.f32 %v578, %v542
        %v610 = vmul.f32 %v579, %v545
        %v611 = vmul.f32 %v580, %v548
        %v612 = vld [vmem:[#allocation2] sm:$0xff]
        %v613 = vld [vmem:[#allocation2 + $0x8] sm:$0xff]
        %v614 = vld [vmem:[#allocation2 + $0x10] sm:$0xff]
        %v615 = vld [vmem:[#allocation2 + $0x18] sm:$0xff]
        %v616 = vld [vmem:[#allocation2 + $0x20] sm:$0xff]
        %v617 = vld [vmem:[#allocation2 + $0x28] sm:$0xff]
        %v618 = vld [vmem:[#allocation2 + $0x30] sm:$0xff]
        %v619 = vld [vmem:[#allocation2 + $0x38] sm:$0xff]
        %v620 = vld [vmem:[#allocation2 + $0x40] sm:$0xff]
        %v621 = vld [vmem:[#allocation2 + $0x48] sm:$0xff]
        %v622 = vld [vmem:[#allocation2 + $0x50] sm:$0xff]
        %v623 = vld [vmem:[#allocation2 + $0x58] sm:$0xff]
        %v624 = vld [vmem:[#allocation2 + $0x60] sm:$0xff]
        %v625 = vld [vmem:[#allocation2 + $0x68] sm:$0xff]
        %v626 = vld [vmem:[#allocation2 + $0x70] sm:$0xff]
        %v627 = vld [vmem:[#allocation2 + $0x78] sm:$0xff]
        %v628 = vld [vmem:[#allocation2 + $0x80] sm:$0xff]
        %v629 = vld [vmem:[#allocation2 + $0x88] sm:$0xff]
        %v630 = vld [vmem:[#allocation2 + $0x90] sm:$0xff]
        %v631 = vld [vmem:[#allocation2 + $0x98] sm:$0xff]
        %v632 = vld [vmem:[#allocation2 + $0xa0] sm:$0xff]
        %v633 = vld [vmem:[#allocation2 + $0xa8] sm:$0xff]
        %v634 = vld [vmem:[#allocation2 + $0xb0] sm:$0xff]
        %v635 = vld [vmem:[#allocation2 + $0xb8] sm:$0xff]
        %v636 = vld [vmem:[#allocation2 + $0xc0] sm:$0xff]
        %v637 = vld [vmem:[#allocation2 + $0xc8] sm:$0xff]
        %v638 = vld [vmem:[#allocation2 + $0xd0] sm:$0xff]
        %v639 = vld [vmem:[#allocation2 + $0xd8] sm:$0xff]
        %v640 = vld [vmem:[#allocation2 + $0xe0] sm:$0xff]
        %v641 = vld [vmem:[#allocation2 + $0xe8] sm:$0xff]
        %v642 = vld [vmem:[#allocation2 + $0xf0] sm:$0xff]
        %v643 = vld [vmem:[#allocation2 + $0xf8] sm:$0xff]
        %v644 = vld [vmem:[%s4] sm:$0x3]
        %v646 = vperm.slane %v644, 0
        %v647 = vperm.slane %v644, 1
        %650 = vmatpush.msra.mxu0 %v642
        %651 = vmatpush.msra.mxu0 %v640
        %652 = vmatpush.msra.mxu0 %v638
        %653 = vmatpush.msra.mxu0 %v636
        %654 = vmatpush.msra.mxu0 %v634
        %655 = vmatpush.msra.mxu0 %v632
        %656 = vmatpush.msra.mxu0 %v630
        %657 = vmatpush.msra.mxu0 %v628
        %658 = vmatpush.msra.mxu0 %v626
        %659 = vmatpush.msra.mxu0 %v624
        %660 = vmatpush.msra.mxu0 %v622
        %661 = vmatpush.msra.mxu0 %v620
        %662 = vmatpush.msra.mxu0 %v618
        %663 = vmatpush.msra.mxu0 %v616
        %664 = vmatpush.msra.mxu0 %v614
        %665 = vmatpush.msra.mxu0 %v612
        %666 = vmatmul.f32.gmra.mxu0 %v581
        %v667 = vpop.f32.mrf.mxu0
        %v668 = vadd.f32 %v646, %v667
        %669 = vmatmul.f32.gmra.mxu0 %v582
        %v670 = vpop.f32.mrf.mxu0
        %v671 = vadd.f32 %v646, %v670
        %672 = vmatmul.f32.gmra.mxu0 %v583
        %v673 = vpop.f32.mrf.mxu0
        %v674 = vadd.f32 %v646, %v673
        %675 = vmatmul.f32.gmra.mxu0 %v584
        %v676 = vpop.f32.mrf.mxu0
        %v677 = vadd.f32 %v646, %v676
        %678 = vmatmul.f32.gmra.mxu0 %v585
        %v679 = vpop.f32.mrf.mxu0
        %v680 = vadd.f32 %v646, %v679
        %681 = vmatmul.f32.gmra.mxu0 %v586
        %v682 = vpop.f32.mrf.mxu0
        %v683 = vadd.f32 %v646, %v682
        %684 = vmatmul.f32.gmra.mxu0 %v587
        %v685 = vpop.f32.mrf.mxu0
        %v686 = vadd.f32 %v646, %v685
        %687 = vmatmul.f32.gmra.mxu0 %v588
        %v688 = vpop.f32.mrf.mxu0
        %v689 = vadd.f32 %v646, %v688
        %690 = vmatmul.f32.gmra.mxu0 %v589
        %v691 = vpop.f32.mrf.mxu0
        %v692 = vadd.f32 %v646, %v691
        %693 = vmatmul.f32.gmra.mxu0 %v590
        %v694 = vpop.f32.mrf.mxu0
        %v695 = vadd.f32 %v646, %v694
        %696 = vmatmul.f32.gmra.mxu0 %v591
        %v697 = vpop.f32.mrf.mxu0
        %v698 = vadd.f32 %v646, %v697
        %699 = vmatmul.f32.gmra.mxu0 %v592
        %v700 = vpop.f32.mrf.mxu0
        %v701 = vadd.f32 %v646, %v700
        %702 = vmatmul.f32.gmra.mxu0 %v593
        %v703 = vpop.f32.mrf.mxu0
        %v704 = vadd.f32 %v646, %v703
        %705 = vmatmul.f32.gmra.mxu0 %v594
        %v706 = vpop.f32.mrf.mxu0
        %v707 = vadd.f32 %v646, %v706
        %708 = vmatmul.f32.gmra.mxu0 %v595
        %v709 = vpop.f32.mrf.mxu0
        %v710 = vadd.f32 %v646, %v709
        %711 = vmatmul.f32.gmra.mxu0 %v596
        %v712 = vpop.f32.mrf.mxu0
        %v713 = vadd.f32 %v646, %v712
        %714 = vmatmul.f32.gmra.mxu0 %v597
        %v715 = vpop.f32.mrf.mxu0
        %v716 = vadd.f32 %v646, %v715
        %717 = vmatmul.f32.gmra.mxu0 %v598
        %v718 = vpop.f32.mrf.mxu0
        %v719 = vadd.f32 %v646, %v718
        %720 = vmatmul.f32.gmra.mxu0 %v599
        %v721 = vpop.f32.mrf.mxu0
        %v722 = vadd.f32 %v646, %v721
        %723 = vmatmul.f32.gmra.mxu0 %v600
        %v724 = vpop.f32.mrf.mxu0
        %v725 = vadd.f32 %v646, %v724
        %726 = vmatmul.f32.gmra.mxu0 %v601
        %v727 = vpop.f32.mrf.mxu0
        %v728 = vadd.f32 %v646, %v727
        %729 = vmatmul.f32.gmra.mxu0 %v602
        %v730 = vpop.f32.mrf.mxu0
        %v731 = vadd.f32 %v646, %v730
        %732 = vmatmul.f32.gmra.mxu0 %v603
        %v733 = vpop.f32.mrf.mxu0
        %v734 = vadd.f32 %v646, %v733
        %735 = vmatmul.f32.gmra.mxu0 %v604
        %v736 = vpop.f32.mrf.mxu0
        %v737 = vadd.f32 %v646, %v736
        %738 = vmatmul.f32.gmra.mxu0 %v605
        %v739 = vpop.f32.mrf.mxu0
        %v740 = vadd.f32 %v646, %v739
        %741 = vmatmul.f32.gmra.mxu0 %v606
        %v742 = vpop.f32.mrf.mxu0
        %v743 = vadd.f32 %v646, %v742
        %744 = vmatmul.f32.gmra.mxu0 %v607
        %v745 = vpop.f32.mrf.mxu0
        %v746 = vadd.f32 %v646, %v745
        %747 = vmatmul.f32.gmra.mxu0 %v608
        %v748 = vpop.f32.mrf.mxu0
        %v749 = vadd.f32 %v646, %v748
        %750 = vmatmul.f32.gmra.mxu0 %v609
        %v751 = vpop.f32.mrf.mxu0
        %v752 = vadd.f32 %v646, %v751
        %753 = vmatmul.f32.gmra.mxu0 %v610
        %v754 = vpop.f32.mrf.mxu0
        %v755 = vadd.f32 %v646, %v754
        %756 = vmatmul.f32.gmra.mxu0 %v611
        %v757 = vpop.f32.mrf.mxu0
        %v758 = vadd.f32 %v646, %v757
        %759 = vdwg.mxu0
        %760 = vmatpush.msra.mxu0 %v643
        %761 = vmatpush.msra.mxu0 %v641
        %762 = vmatpush.msra.mxu0 %v639
        %763 = vmatpush.msra.mxu0 %v637
        %764 = vmatpush.msra.mxu0 %v635
        %765 = vmatpush.msra.mxu0 %v633
        %766 = vmatpush.msra.mxu0 %v631
        %767 = vmatpush.msra.mxu0 %v629
        %768 = vmatpush.msra.mxu0 %v627
        %769 = vmatpush.msra.mxu0 %v625
        %770 = vmatpush.msra.mxu0 %v623
        %771 = vmatpush.msra.mxu0 %v621
        %772 = vmatpush.msra.mxu0 %v619
        %773 = vmatpush.msra.mxu0 %v617
        %774 = vmatpush.msra.mxu0 %v615
        %775 = vmatpush.msra.mxu0 %v613
        %776 = vmatmul.f32.gmra.mxu0 %v581
        %v777 = vpop.f32.mrf.mxu0
        %v778 = vadd.f32 %v647, %v777
        %779 = vmatmul.f32.gmra.mxu0 %v582
        %v780 = vpop.f32.mrf.mxu0
        %v781 = vadd.f32 %v647, %v780
        %782 = vmatmul.f32.gmra.mxu0 %v583
        %v783 = vpop.f32.mrf.mxu0
        %v784 = vadd.f32 %v647, %v783
        %785 = vmatmul.f32.gmra.mxu0 %v584
        %v786 = vpop.f32.mrf.mxu0
        %v787 = vadd.f32 %v647, %v786
        %788 = vmatmul.f32.gmra.mxu0 %v585
        %v789 = vpop.f32.mrf.mxu0
        %v790 = vadd.f32 %v647, %v789
        %791 = vmatmul.f32.gmra.mxu0 %v586
        %v792 = vpop.f32.mrf.mxu0
        %v793 = vadd.f32 %v647, %v792
        %794 = vmatmul.f32.gmra.mxu0 %v587
        %v795 = vpop.f32.mrf.mxu0
        %v796 = vadd.f32 %v647, %v795
        %797 = vmatmul.f32.gmra.mxu0 %v588
        %v798 = vpop.f32.mrf.mxu0
        %v799 = vadd.f32 %v647, %v798
        %800 = vmatmul.f32.gmra.mxu0 %v589
        %v801 = vpop.f32.mrf.mxu0
        %v802 = vadd.f32 %v647, %v801
        %803 = vmatmul.f32.gmra.mxu0 %v590
        %v804 = vpop.f32.mrf.mxu0
        %v805 = vadd.f32 %v647, %v804
        %806 = vmatmul.f32.gmra.mxu0 %v591
        %v807 = vpop.f32.mrf.mxu0
        %v808 = vadd.f32 %v647, %v807
        %809 = vmatmul.f32.gmra.mxu0 %v592
        %v810 = vpop.f32.mrf.mxu0
        %v811 = vadd.f32 %v647, %v810
        %812 = vmatmul.f32.gmra.mxu0 %v593
        %v813 = vpop.f32.mrf.mxu0
        %v814 = vadd.f32 %v647, %v813
        %815 = vmatmul.f32.gmra.mxu0 %v594
        %v816 = vpop.f32.mrf.mxu0
        %v817 = vadd.f32 %v647, %v816
        %818 = vmatmul.f32.gmra.mxu0 %v595
        %v819 = vpop.f32.mrf.mxu0
        %v820 = vadd.f32 %v647, %v819
        %821 = vmatmul.f32.gmra.mxu0 %v596
        %v822 = vpop.f32.mrf.mxu0
        %v823 = vadd.f32 %v647, %v822
        %824 = vmatmul.f32.gmra.mxu0 %v597
        %v825 = vpop.f32.mrf.mxu0
        %v826 = vadd.f32 %v647, %v825
        %827 = vmatmul.f32.gmra.mxu0 %v598
        %v828 = vpop.f32.mrf.mxu0
        %v829 = vadd.f32 %v647, %v828
        %830 = vmatmul.f32.gmra.mxu0 %v599
        %v831 = vpop.f32.mrf.mxu0
        %v832 = vadd.f32 %v647, %v831
        %833 = vmatmul.f32.gmra.mxu0 %v600
        %v834 = vpop.f32.mrf.mxu0
        %v835 = vadd.f32 %v647, %v834
        %836 = vmatmul.f32.gmra.mxu0 %v601
        %v837 = vpop.f32.mrf.mxu0
        %v838 = vadd.f32 %v647, %v837
        %839 = vmatmul.f32.gmra.mxu0 %v602
        %v840 = vpop.f32.mrf.mxu0
        %v841 = vadd.f32 %v647, %v840
        %842 = vmatmul.f32.gmra.mxu0 %v603
        %v843 = vpop.f32.mrf.mxu0
        %v844 = vadd.f32 %v647, %v843
        %845 = vmatmul.f32.gmra.mxu0 %v604
        %v846 = vpop.f32.mrf.mxu0
        %v847 = vadd.f32 %v647, %v846
        %848 = vmatmul.f32.gmra.mxu0 %v605
        %v849 = vpop.f32.mrf.mxu0
        %v850 = vadd.f32 %v647, %v849
        %851 = vmatmul.f32.gmra.mxu0 %v606
        %v852 = vpop.f32.mrf.mxu0
        %v853 = vadd.f32 %v647, %v852
        %854 = vmatmul.f32.gmra.mxu0 %v607
        %v855 = vpop.f32.mrf.mxu0
        %v856 = vadd.f32 %v647, %v855
        %857 = vmatmul.f32.gmra.mxu0 %v608
        %v858 = vpop.f32.mrf.mxu0
        %v859 = vadd.f32 %v647, %v858
        %860 = vmatmul.f32.gmra.mxu0 %v609
        %v861 = vpop.f32.mrf.mxu0
        %v862 = vadd.f32 %v647, %v861
        %863 = vmatmul.f32.gmra.mxu0 %v610
        %v864 = vpop.f32.mrf.mxu0
        %v865 = vadd.f32 %v647, %v864
        %866 = vmatmul.f32.gmra.mxu0 %v611
        %v867 = vpop.f32.mrf.mxu0
        %v868 = vadd.f32 %v647, %v867
        %869 = vdwg.mxu0
        %870 = vst [vmem:[%s275] sm:$0xff] %v668
        %871 = vst [vmem:[%s275 + $0x8] sm:$0xff] %v778
        %872 = vst [vmem:[%s275 + $0x10] sm:$0xff] %v671
        %873 = vst [vmem:[%s275 + $0x18] sm:$0xff] %v781
        %874 = vst [vmem:[%s275 + $0x20] sm:$0xff] %v674
        %875 = vst [vmem:[%s275 + $0x28] sm:$0xff] %v784
        %876 = vst [vmem:[%s275 + $0x30] sm:$0xff] %v677
        %877 = vst [vmem:[%s275 + $0x38] sm:$0xff] %v787
        %878 = vst [vmem:[%s275 + $0x40] sm:$0xff] %v680
        %879 = vst [vmem:[%s275 + $0x48] sm:$0xff] %v790
        %880 = vst [vmem:[%s275 + $0x50] sm:$0xff] %v683
        %881 = vst [vmem:[%s275 + $0x58] sm:$0xff] %v793
        %882 = vst [vmem:[%s275 + $0x60] sm:$0xff] %v686
        %883 = vst [vmem:[%s275 + $0x68] sm:$0xff] %v796
        %884 = vst [vmem:[%s275 + $0x70] sm:$0xff] %v689
        %885 = vst [vmem:[%s275 + $0x78] sm:$0xff] %v799
        %886 = vst [vmem:[%s275 + $0x80] sm:$0xff] %v692
        %887 = vst [vmem:[%s275 + $0x88] sm:$0xff] %v802
        %888 = vst [vmem:[%s275 + $0x90] sm:$0xff] %v695
        %889 = vst [vmem:[%s275 + $0x98] sm:$0xff] %v805
        %890 = vst [vmem:[%s275 + $0xa0] sm:$0xff] %v698
        %891 = vst [vmem:[%s275 + $0xa8] sm:$0xff] %v808
        %892 = vst [vmem:[%s275 + $0xb0] sm:$0xff] %v701
        %893 = vst [vmem:[%s275 + $0xb8] sm:$0xff] %v811
        %894 = vst [vmem:[%s275 + $0xc0] sm:$0xff] %v704
        %895 = vst [vmem:[%s275 + $0xc8] sm:$0xff] %v814
        %896 = vst [vmem:[%s275 + $0xd0] sm:$0xff] %v707
        %897 = vst [vmem:[%s275 + $0xd8] sm:$0xff] %v817
        %898 = vst [vmem:[%s275 + $0xe0] sm:$0xff] %v710
        %899 = vst [vmem:[%s275 + $0xe8] sm:$0xff] %v820
        %900 = vst [vmem:[%s275 + $0xf0] sm:$0xff] %v713
        %901 = vst [vmem:[%s275 + $0xf8] sm:$0xff] %v823
        %902 = vst [vmem:[%s275 + $0x100] sm:$0xff] %v716
        %903 = vst [vmem:[%s275 + $0x108] sm:$0xff] %v826
        %904 = vst [vmem:[%s275 + $0x110] sm:$0xff] %v719
        %905 = vst [vmem:[%s275 + $0x118] sm:$0xff] %v829
        %906 = vst [vmem:[%s275 + $0x120] sm:$0xff] %v722
        %907 = vst [vmem:[%s275 + $0x128] sm:$0xff] %v832
        %908 = vst [vmem:[%s275 + $0x130] sm:$0xff] %v725
        %909 = vst [vmem:[%s275 + $0x138] sm:$0xff] %v835
        %910 = vst [vmem:[%s275 + $0x140] sm:$0xff] %v728
        %911 = vst [vmem:[%s275 + $0x148] sm:$0xff] %v838
        %912 = vst [vmem:[%s275 + $0x150] sm:$0xff] %v731
        %913 = vst [vmem:[%s275 + $0x158] sm:$0xff] %v841
        %914 = vst [vmem:[%s275 + $0x160] sm:$0xff] %v734
        %915 = vst [vmem:[%s275 + $0x168] sm:$0xff] %v844
        %916 = vst [vmem:[%s275 + $0x170] sm:$0xff] %v737
        %917 = vst [vmem:[%s275 + $0x178] sm:$0xff] %v847
        %918 = vst [vmem:[%s275 + $0x180] sm:$0xff] %v740
        %919 = vst [vmem:[%s275 + $0x188] sm:$0xff] %v850
        %920 = vst [vmem:[%s275 + $0x190] sm:$0xff] %v743
        %921 = vst [vmem:[%s275 + $0x198] sm:$0xff] %v853
        %922 = vst [vmem:[%s275 + $0x1a0] sm:$0xff] %v746
        %923 = vst [vmem:[%s275 + $0x1a8] sm:$0xff] %v856
        %924 = vst [vmem:[%s275 + $0x1b0] sm:$0xff] %v749
        %925 = vst [vmem:[%s275 + $0x1b8] sm:$0xff] %v859
        %926 = vst [vmem:[%s275 + $0x1c0] sm:$0xff] %v752
        %927 = vst [vmem:[%s275 + $0x1c8] sm:$0xff] %v862
        %928 = vst [vmem:[%s275 + $0x1d0] sm:$0xff] %v755
        %929 = vst [vmem:[%s275 + $0x1d8] sm:$0xff] %v865
        %930 = vst [vmem:[%s275 + $0x1e0] sm:$0xff] %v758
        %931 = vst [vmem:[%s275 + $0x1e8] sm:$0xff] %v868
        %s932 = sand.u32 %s143, 1
        %s933 = scalar_lea.sflag [#allocation4], %s932
        %s934 = sand.u32 %s143, 1
        %s935 = smul.addr %s934, 496
        %s936 = scalar_lea.vmem [#allocation5], %s935
        // Predicated region
        $region45: #{tpu_custom_call.1} parent=39 // pred_check
          %p937 = pneg %p153
        $region46: #{tpu_custom_call.1} parent=39 // pred_check_branch
          %939 = sbr.rel (%p937) target = $region48
        $region47: #{tpu_custom_call.1} parent=39 // pred_region
          %s940 = smul.u32 31, %s20
          %s941 = ssub.s32 32, %s940
          %p942 = scmp.lt.s32.totalorder %s941, 31
          %s943 = scalar_select %p942, %s941, 31
          %s944 = smul.u32 8, %s943
          %s945 = smul.u32 %s944, 2
          %s946 = ssub.s32 496, %s945
          %s947 = sshll.u32 %s946, 4
          %948 = vsyncadd %s933, %s947
          %p949 = scmp.ne.s32.totalorder 0, %s945
          %s950 = smul.addr %s940, 2
          %s951 = smul.addr %s950, 8
          %s952 = scalar_lea.hbm %s5, %s951
          %s953 = smul.u32 16, %s943
          %s954 = sshll.u32 %s936, 4
          %s955 = int_to_ptr.vmem [resolvable:$true] %s954
          %s956 = sshll.u32 %s952, 4
          %s957 = int_to_ptr.hbm [resolvable:$true] %s956
          %s958 = sshll.u32 %s953, 4
          %962 = dma.vmem_to_hbm [thread:$0]  (%p949), %s955, %s958, %s957, %s933, 256, 256, 16
        $region48: #{tpu_custom_call.1} parent=39 // pred_fallthru
          _
      $region40: #{tpu_custom_call.1} parent=5 // pred_fallthru
        _
      %p963 = scmp.le.s32.totalorder 2, %s15
      // Predicated region
      $region49: #{tpu_custom_call.1} parent=5 // pred_check
        %p964 = pneg %p963
      $region50: #{tpu_custom_call.1} parent=5 // pred_check_branch
        %966 = sbr.rel (%p964) target = $region52
      $region51: #{tpu_custom_call.1} parent=5 // pred_region
        %s967 = ssub.s32 %s15, 2
        // Predicated region
        $region53: #{tpu_custom_call.1} parent=51 // pred_check
          %p968 = pneg %p159
        $region54: #{tpu_custom_call.1} parent=51 // pred_check_branch
          %970 = sbr.rel (%p968) target = $region56
        $region55: #{tpu_custom_call.1} parent=51 // pred_region
          %s971 = sand.u32 %s144, 1
          %s972 = scalar_lea.sflag [#allocation4], %s971
          %s973 = sand.u32 %s144, 1
          %s974 = smul.addr %s973, 496
          %s975 = scalar_lea.vmem [#allocation5], %s974
          %977 = dma.done %s972, 7936
        $region56: #{tpu_custom_call.1} parent=51 // pred_fallthru
          _
      $region52: #{tpu_custom_call.1} parent=5 // pred_fallthru
        _
    $region6: #{tpu_custom_call.1} parent=1 // loop_footer
      %s19 = sadd.s32 1, %s15
    $region7: #{tpu_custom_call.1} parent=1 // loop_footer_branch
      %14 = sbr.rel target = $region3
    $region8: #{tpu_custom_call.1} parent=1 // loop_exit
      _
    %978 = vsyncpa [#allocation3], 1
    %s979 = scalar_lea.sflag [#allocation3], 1
    %980 = vsyncpa %s979, 1
    %981 = vsyncpa [#allocation4], 1
    %s982 = scalar_lea.sflag [#allocation4], 1
    %983 = vsyncpa %s982, 1

</llo_original>
